<compile_context>
chip_gen: v7x
topology: tpu7x:2x2x1
jax: 0.10.0
libtpu: 0.0.40
codegen_flags: <defaults>
</compile_context>

<pallas_src>
import jax
import jax.numpy as jnp
from jax.experimental import pallas as pl
from jax.experimental.pallas import tpu as pltpu


def _make_broadcast_kernel(tb, feat_padded, chunk_rows):
    """Kernel that fills a (tb, feat_padded) output tile with row pa_ref."""
    n_chunks = tb // chunk_rows  # chunk_rows always divides tb (see chooser)

    def kernel(pa_ref, o_ref):
        # pa_ref: (1, F) VMEM tile -- same block index every grid step, so it
        #         is fetched once and stays resident.
        # o_ref : (TB, F) lane-dense output tile for batch tile program_id(0).
        # One sublane-broadcast per step, re-stored per chunk: keeps vreg
        # pressure at <= chunk_rows*F/1024 vregs (<=32 here) and lets stores
        # stream as full-width unmasked vst's instead of copying a big
        # materialized VMEM temp.
        chunk = jnp.broadcast_to(pa_ref[...], (chunk_rows, feat_padded))
        if n_chunks == 1:
            o_ref[...] = chunk
        else:
            # Static starts -> fully static slices, zero runtime index math.
            for c in range(n_chunks):
                o_ref[c * chunk_rows:(c + 1) * chunk_rows, :] = chunk

    return kernel


def _choose_batch_tile(batch, feat_padded, bytes_per_elem,
                       target_tile_bytes=1 * 1024 * 1024):
    """Pick batch tile TB.

    - TB % 8 == 0 (TB % 128 == 0 when large), or TB == batch for tiny batches.
    - ~1 MiB per output tile (85%+ of HBM roofline, <3% per-step overhead).
    - >= 4 grid steps for large batches so v7x's two TensorCores each get
      >= 2 steps (overlap + load balance); no-op on single-TC v5e / v6e.
    """
    if batch <= 8:
        return batch  # block dim == full array dim: always a legal block shape
    row_bytes = feat_padded * bytes_per_elem
    rows = max(8, target_tile_bytes // row_bytes)
    quarter = -(-batch // 4)            # ceil(batch / 4)
    quarter = max(8, -(-quarter // 8) * 8)
    rows = min(rows, quarter, batch)
    if rows >= 128:
        rows = (rows // 128) * 128      # even 128-row chunking inside the tile
    else:
        rows = (rows // 8) * 8
    return max(8, int(rows))


def mlp_encoder_sd_forward(pa, inputs):
    """Equivalent of MLPEncoder_SD.forward.

    pa:     (N, M) float32 parameter
    inputs: any array whose leading dim is the batch size B
    returns (B, N, M) float32
    """
    batch = inputs.shape[0]
    N, M = pa.shape
    feat = N * M
    dtype = pa.dtype
    bpe = jnp.dtype(dtype).itemsize

    # Lane-dense layout: flatten PA to (1, N*M) and pad the feature axis up to
    # a multiple of 128 so stores never become masked vst.msk partial stores.
    # (feat = 256 for the reference module -> no padding taken.)
    feat_padded = max(128, -(-feat // 128) * 128)
    pa_flat = pa.reshape(1, feat)
    if feat_padded != feat:
        pa_flat = jnp.pad(pa_flat, ((0, 0), (0, feat_padded - feat)))

    tb = _choose_batch_tile(batch, feat_padded, bpe)
    chunk_rows = min(tb, 128)
    grid = (pl.cdiv(batch, tb),)

    kernel = _make_broadcast_kernel(tb, feat_padded, chunk_rows)

    out_flat = pl.pallas_call(
        kernel,
        out_shape=jax.ShapeDtypeStruct((batch, feat_padded), dtype),
        grid=grid,
        in_specs=[pl.BlockSpec((1, feat_padded), lambda i: (0, 0))],
        out_specs=pl.BlockSpec((tb, feat_padded), lambda i: (i, 0)),
        compiler_params=pltpu.CompilerParams(
            # Batch-tile axis is independent -> shardable across v7x's two
            # TensorCores; ~0% delta on single-TC v5e/v6e.
            dimension_semantics=("parallel",),
            # With ~1 MiB tiles the double-buffered output (+ tiny input block)
            # fits every generation's default scoped-VMEM budget, so we do not
            # override vmem_limit_bytes (keeps VMEM headroom for composition).
        ),
        cost_estimate=pl.CostEstimate(
            flops=0,
            transcendentals=0,
            bytes_accessed=batch * feat_padded * bpe + feat_padded * bpe,
        ),
    )(pa_flat)

    if feat_padded != feat:
        out_flat = out_flat[:, :feat]
    # Contiguous reshape back to (B, N, M) -- pure metadata, free.
    return out_flat.reshape(batch, N, M)


if __name__ == "__main__":
    key = jax.random.PRNGKey(0)

    # Skeleton shape (as in the module __init__): PA has skeleton's shape;
    # nn.init.constant_(self.PA, 1e-06).
    N, M = 16, 16
    pa = jnp.full((N, M), 1e-06, dtype=jnp.float32)

    # Example inputs — only inputs.shape[0] matters for the forward pass.
    x = jax.random.normal(key, (2, 4, 16, 16), dtype=jnp.float32)
    out = jax.block_until_ready(mlp_encoder_sd_forward(pa, x))
    ref = jnp.broadcast_to(pa[None, :, :], (x.shape[0], N, M))
    assert out.shape == (2, N, M)
    assert out.dtype == jnp.float32
    assert bool(jnp.array_equal(out, ref))

    # Multi-step path with a partial final batch tile
    # (B=20 -> TB=8 -> 3 grid steps, 4-row masked tail).
    x2 = jax.random.normal(key, (20, 4, 16, 16), dtype=jnp.float32)
    out2 = jax.block_until_ready(mlp_encoder_sd_forward(pa, x2))
    ref2 = jnp.broadcast_to(pa[None, :, :], (20, N, M))
    assert out2.shape == (20, N, M)
    assert bool(jnp.array_equal(out2, ref2))

    # Padded-feature path (N*M not a multiple of 128 -> lane padding + slice).
    pa_odd = jnp.full((5, 7), 1e-06, dtype=jnp.float32)
    x3 = jax.random.normal(key, (10, 3), dtype=jnp.float32)
    out3 = jax.block_until_ready(mlp_encoder_sd_forward(pa_odd, x3))
    ref3 = jnp.broadcast_to(pa_odd[None, :, :], (10, 5, 7))
    assert out3.shape == (10, 5, 7)
    assert bool(jnp.array_equal(out3, ref3))

    print("KERNEL_OK")
</pallas_src>

<mosaic_0001>
module attributes {stable_mosaic.version = 11 : i64} {
  func.func @kernel(%arg0: i32, %arg1: memref<1x256xf32, #tpu.memory_space<vmem>>, %arg2: memref<2x256xf32, #tpu.memory_space<vmem>>) attributes {dimension_semantics = [#tpu.dimension_semantics<parallel>], iteration_bounds = array<i64: 1>, scalar_prefetch = 0 : i64, scratch_operands = 0 : i64, tpu.core_type = #tpu.core_type<tc>, window_params = [{pipeline_mode = #tpu.pipeline_mode<synchronous>, transform_indices = @transform_0, window_bounds = array<i64: 1, 256>}, {transform_indices = @transform_1, window_bounds = array<i64: 2, 256>}]} {
    %c0 = arith.constant 0 : index
    %c0_0 = arith.constant 0 : index
    %0 = vector.load %arg1[%c0, %c0_0] : memref<1x256xf32, #tpu.memory_space<vmem>>, vector<1x256xf32>
    %1 = vector.shape_cast %0 : vector<1x256xf32> to vector<1x256xf32>
    %2 = vector.broadcast %1 : vector<1x256xf32> to vector<2x256xf32>
    %c0_1 = arith.constant 0 : index
    %c0_2 = arith.constant 0 : index
    %3 = vector.load %arg2[%c0_1, %c0_2] : memref<2x256xf32, #tpu.memory_space<vmem>>, vector<2x256xf32>
    tpu.vector_store %arg2[%c0_1, %c0_2], %2 {strides = array<i32>} : memref<2x256xf32, #tpu.memory_space<vmem>>, vector<2x256xf32>,
    return
  }
  func.func @transform_0(%arg0: i32) -> (i32, i32) {
    %c0_i32 = arith.constant 0 : i32
    %c0_i32_0 = arith.constant 0 : i32
    %c0_i32_1 = arith.constant 0 : i32
    return %c0_i32, %c0_i32_0 : i32, i32
  }
  func.func @transform_1(%arg0: i32) -> (i32, i32) {
    %c0_i32 = arith.constant 0 : i32
    %c0_i32_0 = arith.constant 0 : i32
    return %arg0, %c0_i32 : i32, i32
  }
}

</mosaic_0001>

<llo_original>
// kernel: tpu_custom_call.1
$region0: #{tpu_custom_call.1}
  #allocation0 [shape = 'u32[]', space=smem, size = 0x4, offset = 0x4, fixed_abs, tag = 'smem constant byte address 0x4 - core index']
  #allocation1 [shape = 'u32[144,128]{1,0:T(1,128)}', space=vmem, size = 0x12000, scoped, tag = 'internal scratch']
  %s0 = inlined_call_operand.hbm [shape: f32[1,256], index: 0, kind: input, shape index: {}]
  %s1 = inlined_call_operand.hbm [shape: f32[2,256], index: 1, kind: output, shape index: {}]
  %s2 = sld [smem:[#allocation0]]
  $region18: #{tpu_custom_call.1} parent=0
    _
  %s4 = ssub.s32 1, %s2
  %s5 = scalar_select 0, %s4, %s2
  $region1: #{tpu_custom_call.1} parent=0
    #allocation2 [shape = 'u8[1024]{0}', space=vmem, size = 0x400, scoped, tag = 'input window, operand 0, single buffered']
    #allocation3 [shape = 's32[1]{0}', space=sflag, size = 0x4, scoped, tag = 'scoped memory for tpu_custom_call.1']
    #allocation4 [shape = 's32[1]{0}', space=sflag, size = 0x4, scoped, tag = 'scoped memory for tpu_custom_call.1']
    #allocation5 [shape = 'u8[2048]{0}', space=vmem, size = 0x800, scoped, tag = 'output window, operand 0, single buffered']
    %6 = vsyncpa [#allocation3], 0
    %7 = vsyncpa [#allocation4], 0
    // Predicated region
    $region2: #{tpu_custom_call.1} parent=1 // pred_check
      _
    $region3: #{tpu_custom_call.1} parent=1 // pred_check_branch
      %9 = sbr.rel (0) target = $region5
    $region4: #{tpu_custom_call.1} parent=1 // pred_region
      %s11 = ssub.s32 32, 32
      %12 = vsyncadd [#allocation3], %s11
      %s14 = sshll.u32 [#allocation2], 4
      %s15 = int_to_ptr.vmem [resolvable:$true] %s14
      %17 = dma.hbm_to_vmem [thread:$0]  %s0, 32, %s15, [#allocation3]
    $region5: #{tpu_custom_call.1} parent=1 // pred_fallthru
      _
    // Predicated region
    $region6: #{tpu_custom_call.1} parent=1 // pred_check
      _
    $region7: #{tpu_custom_call.1} parent=1 // pred_check_branch
      %19 = sbr.rel (0) target = $region9
    $region8: #{tpu_custom_call.1} parent=1 // pred_region
      %20 = dma.done [#allocation3], 32
    $region9: #{tpu_custom_call.1} parent=1 // pred_fallthru
      _
    %v21 = vld [vmem:[#allocation2] sm:$0x3]
    %v23 = vlaneseq
    %v24 = vshrl.u32 %v23, 7
    %v25 = vsub.s32 0, %v24
    %v26 = vrot.slane %v21, %v25
    %v27 = vlaneseq
    %v28 = vshrl.u32 %v27, 7
    %v29 = vsub.s32 1, %v28
    %v30 = vrot.slane %v21, %v29
    %v31 = vcombine.low %v26, %v30
    %v33 = vunpack.c.l.s4 1983009808
    %v34 = vunpack.c.0.s8 %v33
    %v35 = vlaneseq
    %v36 = vshrl.u32 %v35, 7
    %v37 = vsub.s32 %v34, %v36
    %v38 = vrot.slane %v31, %v37
    %40 = vst [vmem:[#allocation5] sm:$0xf] %v38
    // Predicated region
    $region10: #{tpu_custom_call.1} parent=1 // pred_check
      _
    $region11: #{tpu_custom_call.1} parent=1 // pred_check_branch
      %42 = sbr.rel (0) target = $region13
    $region12: #{tpu_custom_call.1} parent=1 // pred_region
      %s44 = ssub.s32 64, 64
      %45 = vsyncadd [#allocation4], %s44
      %s47 = sshll.u32 [#allocation5], 4
      %s48 = int_to_ptr.vmem [resolvable:$true] %s47
      %50 = dma.vmem_to_hbm [thread:$0]  %s48, 64, %s1, [#allocation4]
    $region13: #{tpu_custom_call.1} parent=1 // pred_fallthru
      _
    // Predicated region
    $region14: #{tpu_custom_call.1} parent=1 // pred_check
      _
    $region15: #{tpu_custom_call.1} parent=1 // pred_check_branch
      %52 = sbr.rel (0) target = $region17
    $region16: #{tpu_custom_call.1} parent=1 // pred_region
      %53 = dma.done [#allocation4], 64
    $region17: #{tpu_custom_call.1} parent=1 // pred_fallthru
      _
    %54 = vsyncpa [#allocation3], 1
    %55 = vsyncpa [#allocation4], 1

</llo_original>
